<compile_context>
chip_gen: v7x
topology: tpu7x:2x2x1
jax: 0.10.0
libtpu: 0.0.40
codegen_flags: <defaults>
</compile_context>

<pallas_src>
import functools

import jax
import jax.numpy as jnp
from jax.experimental import pallas as pl
from jax.experimental.pallas import tpu as pltpu


def _round_up(v, m):
    return (v + m - 1) // m * m


def _final_blaze_kernel(B, Ho, Wo, C, x_ref, w6_ref, pw2_ref, b_ref, out_ref):
    """One batch-block of FinalBlazeBlock.

    x_ref  : (B, Ho, 2, Wo, 2C) UNPADDED regrouped NHWC input, where
             x_ref[n, i, a, j, b*C + c] == x[n, 2*i + a, 2*j + b, c].
             The PyTorch F.pad(x, (0,2,0,2)) zero pad is realized in-kernel by
             zero-filled shifts (the 2nd pad row/col is never read by any
             valid output position of the stride-2, k=3 conv).
    w6_ref : (6, 2C) packed depthwise taps, one row per (row-parity, kh, kw) slab
    pw2_ref: (2C, Np) pointwise weight, pre-transposed, duplicated over W
             parity, zero-padded on the output (lane) axis to Np
    b_ref  : (1, Np)  fused bias (pw @ dw_bias + pw_bias), zero-padded to Np
    out_ref: (B*Ho*Wo, Np)
    """
    f32 = jnp.float32
    C2 = 2 * C

    xe = x_ref[:, :, 0, :, :].astype(f32)   # even input rows  (B, Ho, Wo, 2C)
    xo = x_ref[:, :, 1, :, :].astype(f32)   # odd input rows
    w6 = w6_ref[...].astype(f32)

    # Zero-filled shift by one output column: supplies the kw=2 tap (next even
    # input column; zero past the right edge == the PyTorch pad column).
    # Only two of these are materialized and reused for all three kh rows.
    zcol = jnp.zeros((B, Ho, 1, C2), f32)

    def shift_w(t):
        return jnp.concatenate([t[:, :, 1:, :], zcol], axis=2)

    xe_w = shift_w(xe)
    xo_w = shift_w(xo)

    row_top = xe * w6[0] + xe_w * w6[1]     # kh = 0 taps (kw 0/1 | kw 2)
    row_mid = xo * w6[2] + xo_w * w6[3]     # kh = 1 taps
    row_bot = xe * w6[4] + xe_w * w6[5]     # kh = 2 taps -> belong to row i-1

    # Zero-filled shift by one output row: kh=2 reads the next even input row;
    # zero past the bottom edge == the PyTorch pad row.
    zrow = jnp.zeros((B, 1, Wo, C2), f32)
    acc = row_top + row_mid + jnp.concatenate([row_bot[:, 1:, :, :], zrow], axis=1)

    # Pointwise 1x1 conv as one MXU matmul over the merged batch*spatial M dim;
    # the duplicated pw2 rows also fold the even/odd W-parity halves together.
    flat = acc.reshape(B * Ho * Wo, C2)
    y = jnp.dot(flat, pw2_ref[...], preferred_element_type=f32)
    y = jnp.maximum(y + b_ref[...], 0.0)
    out_ref[...] = y.astype(out_ref.dtype)


def _pick_batch_block(N, Ho, Wo, per_image_bytes, budget_bytes):
    """Largest batch block that (a) divides N, (b) keeps the flattened output
    block sublane-aligned (multiple of 8 rows), (c) fits `budget_bytes` of
    conservatively-accounted VMEM, and (d) prefers an EVEN grid-step count
    >= 2 so both v7x TensorCores get work under ('parallel',) semantics."""
    divisors = [d for d in range(1, N + 1) if N % d == 0]
    aligned = [d for d in divisors if (d * Ho * Wo) % 8 == 0]
    if not aligned:
        # Degenerate spatial sizes only: a single full-array block is exempt
        # from the (8,128) block-shape constraint.
        return N
    fitting = [d for d in aligned if d * per_image_bytes <= budget_bytes]
    if not fitting:
        fitting = [min(aligned)]
    for pred in (lambda d: (N // d) >= 2 and (N // d) % 2 == 0,  # even, >=2 steps
                 lambda d: (N // d) >= 2,                        # >=2 steps
                 lambda d: True):
        cand = [d for d in fitting if pred(d)]
        if cand:
            return max(cand)


@jax.jit
def final_blaze_block(x_nchw, dw_weight, dw_bias, pw_weight, pw_bias):
    """x_nchw: (N, C, H, W). Weights in PyTorch layout:
       dw_weight (C, 1, 3, 3), dw_bias (C,), pw_weight (C, C, 1, 1), pw_bias (C,).
       Returns (N, C, H//2, W//2)."""
    N, C, H, W = x_nchw.shape
    assert H % 2 == 0 and W % 2 == 0, "even spatial dims assumed (as in BlazeNet)"
    Ho, Wo = H // 2, W // 2
    dtype = x_nchw.dtype
    itemsize = jnp.dtype(dtype).itemsize

    # NCHW -> NHWC (channels on lanes).  NO jnp.pad pass: padding is handled
    # in-kernel.  The regrouping to (N, Ho, 2, Wo, 2C) is metadata-only.
    x_nhwc = jnp.transpose(x_nchw, (0, 2, 3, 1))
    xr = x_nhwc.reshape(N, Ho, 2, Wo, 2 * C)

    # ---- one-time weight packing (wrapper side) ----
    dw_t = jnp.transpose(dw_weight[:, 0, :, :], (1, 2, 0)).astype(jnp.float32)  # (3,3,C)
    zc = jnp.zeros((C,), jnp.float32)
    w6 = jnp.stack([
        jnp.concatenate([dw_t[0, 0], dw_t[0, 1]]),   # kh=0: kw=0 | kw=1
        jnp.concatenate([dw_t[0, 2], zc]),           # kh=0: kw=2
        jnp.concatenate([dw_t[1, 0], dw_t[1, 1]]),   # kh=1: kw=0 | kw=1
        jnp.concatenate([dw_t[1, 2], zc]),           # kh=1: kw=2
        jnp.concatenate([dw_t[2, 0], dw_t[2, 1]]),   # kh=2: kw=0 | kw=1
        jnp.concatenate([dw_t[2, 2], zc]),           # kh=2: kw=2
    ])                                               # (6, 2C)

    # Lane-dense output: pad the pointwise output dim to a multiple of 128
    # (unmasked vst, full MXU N dim).  Skip if it would inflate > 2x (tiny C).
    Np = _round_up(C, 128)
    if Np > 2 * C:
        Np = C

    pw = pw_weight.reshape(C, C).astype(jnp.float32)             # (out, in)
    pw2 = jnp.concatenate([pw.T, pw.T], axis=0)                  # (2C, C)
    b_all = (pw @ dw_bias.astype(jnp.float32)
             + pw_bias.astype(jnp.float32)).reshape(1, C)        # fused bias
    if Np != C:
        pw2 = jnp.pad(pw2, ((0, 0), (0, Np - C)))
        b_all = jnp.pad(b_all, ((0, 0), (0, Np - C)))

    # ---- batch blocking with (8,128)-padded VMEM accounting ----
    wo_p = _round_up(Wo, 8)
    c2_p = _round_up(2 * C, 128)
    np_p = _round_up(Np, 128)
    in_tile = Ho * 2 * wo_p * c2_p * itemsize            # input block, per image
    f32_slab = Ho * wo_p * c2_p * 4                      # one (Ho,Wo,2C) f32 temp
    mm_out = _round_up(Ho * Wo, 8) * np_p * 4            # matmul result, per image
    out_tile = _round_up(Ho * Wo, 8) * np_p * itemsize   # output block, per image
    per_image = (2 * in_tile          # double-buffered input
                 + 6 * f32_slab       # xe/xo, shifts, row/acc temporaries
                 + mm_out
                 + 2 * out_tile)      # double-buffered output
    # ~20 MiB accounted (conservative) per step stays under the 32 MiB limit
    # below on every generation (v5e/v6e 128 MiB physical VMEM, v7x 64 MiB per
    # TC with a 32 MiB scoped default).
    budget = 20 * 1024 * 1024
    B_blk = _pick_batch_block(N, Ho, Wo, per_image, budget)
    grid = (N // B_blk,)

    flops = 2 * N * Ho * Wo * C * 9 + 2 * N * Ho * Wo * (2 * C) * Np
    bytes_accessed = ((N * H * W * C + N * Ho * Wo * Np) * itemsize
                      + (6 * 2 * C + 2 * C * Np + Np) * 4)

    kernel = functools.partial(_final_blaze_kernel, B_blk, Ho, Wo, C)
    out_flat = pl.pallas_call(
        kernel,
        out_shape=jax.ShapeDtypeStruct((N * Ho * Wo, Np), dtype),
        grid=grid,
        in_specs=[
            pl.BlockSpec((B_blk, Ho, 2, Wo, 2 * C), lambda n: (n, 0, 0, 0, 0)),
            # Grid-invariant weights/biases (tiny; fetched once per step, cheap).
            pl.BlockSpec((6, 2 * C), lambda n: (0, 0)),
            pl.BlockSpec((2 * C, Np), lambda n: (0, 0)),
            pl.BlockSpec((1, Np), lambda n: (0, 0)),
        ],
        out_specs=pl.BlockSpec((B_blk * Ho * Wo, Np), lambda n: (n, 0)),
        compiler_params=pltpu.CompilerParams(
            dimension_semantics=("parallel",),
            vmem_limit_bytes=32 * 1024 * 1024,
            # Allow XLA to fuse the NCHW->NHWC transpose/reshape producer into
            # the input fetch instead of materializing it in HBM.
            allow_input_fusion=[True, False, False, False],
        ),
        cost_estimate=pl.CostEstimate(
            flops=int(flops), transcendentals=0,
            bytes_accessed=int(bytes_accessed)),
    )(xr, w6, pw2, b_all)

    out = out_flat[:, :C].reshape(N, Ho, Wo, C)
    return jnp.transpose(out, (0, 3, 1, 2))   # back to NCHW


def _ref_forward(x, dw_weight, dw_bias, pw_weight, pw_bias):
    """Pure-JAX reference matching the PyTorch module exactly."""
    C = x.shape[1]
    xpad = jnp.pad(x, ((0, 0), (0, 0), (0, 2), (0, 2)))
    y = jax.lax.conv_general_dilated(
        xpad, dw_weight, window_strides=(2, 2), padding="VALID",
        dimension_numbers=("NCHW", "OIHW", "NCHW"), feature_group_count=C)
    y = y + dw_bias.reshape(1, C, 1, 1)
    y = jax.lax.conv_general_dilated(
        y, pw_weight, window_strides=(1, 1), padding="VALID",
        dimension_numbers=("NCHW", "OIHW", "NCHW"))
    y = y + pw_bias.reshape(1, C, 1, 1)
    return jnp.maximum(y, 0.0)


if __name__ == "__main__":
    N, C, H, W = 2, 4, 16, 16
    key = jax.random.PRNGKey(0)
    kx, k1, k2, k3, k4 = jax.random.split(key, 5)

    x = jax.random.normal(kx, (N, C, H, W), dtype=jnp.float32)
    # Deterministic synthetic parameters (shapes from FinalBlazeBlock.__init__).
    dw_weight = jax.random.normal(k1, (C, 1, 3, 3), dtype=jnp.float32) * 0.3
    dw_bias = jax.random.normal(k2, (C,), dtype=jnp.float32) * 0.1
    pw_weight = jax.random.normal(k3, (C, C, 1, 1), dtype=jnp.float32) * 0.3
    pw_bias = jax.random.normal(k4, (C,), dtype=jnp.float32) * 0.1

    out = final_blaze_block(x, dw_weight, dw_bias, pw_weight, pw_bias)
    out = jax.block_until_ready(out)

    ref = jax.block_until_ready(_ref_forward(x, dw_weight, dw_bias, pw_weight, pw_bias))
    assert out.shape == ref.shape == (N, C, H // 2, W // 2)
    assert jnp.allclose(out, ref, atol=1e-5, rtol=1e-5), (
        f"max abs err {jnp.max(jnp.abs(out - ref))}")

    print("KERNEL_OK")
</pallas_src>

<mosaic_0001>
module attributes {stable_mosaic.version = 11 : i64} {
  func.func @_final_blaze_kernel(%arg0: i32, %arg1: memref<1x8x2x8x8xf32, #tpu.memory_space<vmem>>, %arg2: memref<6x8xf32, #tpu.memory_space<vmem>>, %arg3: memref<8x4xf32, #tpu.memory_space<vmem>>, %arg4: memref<1x4xf32, #tpu.memory_space<vmem>>, %arg5: memref<64x4xf32, #tpu.memory_space<vmem>>) attributes {dimension_semantics = [#tpu.dimension_semantics<parallel>], iteration_bounds = array<i64: 2>, scalar_prefetch = 0 : i64, scratch_operands = 0 : i64, tpu.core_type = #tpu.core_type<tc>, window_params = [{transform_indices = @transform_0, window_bounds = array<i64: 1, 8, 2, 8, 8>}, {pipeline_mode = #tpu.pipeline_mode<synchronous>, transform_indices = @transform_1, window_bounds = array<i64: 6, 8>}, {pipeline_mode = #tpu.pipeline_mode<synchronous>, transform_indices = @transform_2, window_bounds = array<i64: 8, 4>}, {pipeline_mode = #tpu.pipeline_mode<synchronous>, transform_indices = @transform_3, window_bounds = array<i64: 1, 4>}, {transform_indices = @transform_4, window_bounds = array<i64: 64, 4>}]} {
    %c0 = arith.constant 0 : index
    %c0_0 = arith.constant 0 : index
    %c0_1 = arith.constant 0 : index
    %c0_2 = arith.constant 0 : index
    %c0_3 = arith.constant 0 : index
    %0 = vector.load %arg1[%c0, %c0_0, %c0_1, %c0_2, %c0_3] : memref<1x8x2x8x8xf32, #tpu.memory_space<vmem>>, vector<1x8x1x8x8xf32>
    %1 = vector.shape_cast %0 : vector<1x8x1x8x8xf32> to vector<1x8x8x8xf32>
    %c0_4 = arith.constant 0 : index
    %c0_5 = arith.constant 0 : index
    %c1 = arith.constant 1 : index
    %c0_6 = arith.constant 0 : index
    %c0_7 = arith.constant 0 : index
    %2 = vector.load %arg1[%c0_4, %c0_5, %c1, %c0_6, %c0_7] : memref<1x8x2x8x8xf32, #tpu.memory_space<vmem>>, vector<1x8x1x8x8xf32>
    %3 = vector.shape_cast %2 : vector<1x8x1x8x8xf32> to vector<1x8x8x8xf32>
    %c0_8 = arith.constant 0 : index
    %c0_9 = arith.constant 0 : index
    %4 = vector.load %arg2[%c0_8, %c0_9] : memref<6x8xf32, #tpu.memory_space<vmem>>, vector<6x8xf32>
    %cst = arith.constant 0.000000e+00 : f32
    %5 = vector.broadcast %cst : f32 to vector<1x8x1x8xf32>
    %6 = vector.extract_strided_slice %1 {offsets = [0, 0, 1, 0], sizes = [1, 8, 7, 8], strides = [1, 1, 1, 1]} : vector<1x8x8x8xf32> to vector<1x8x7x8xf32>
    %7 = tpu.concatenate %6, %5 in 2 : vector<1x8x7x8xf32>, vector<1x8x1x8xf32> -> vector<1x8x8x8xf32>
    %8 = vector.extract_strided_slice %3 {offsets = [0, 0, 1, 0], sizes = [1, 8, 7, 8], strides = [1, 1, 1, 1]} : vector<1x8x8x8xf32> to vector<1x8x7x8xf32>
    %9 = tpu.concatenate %8, %5 in 2 : vector<1x8x7x8xf32>, vector<1x8x1x8xf32> -> vector<1x8x8x8xf32>
    %10 = vector.extract_strided_slice %4 {offsets = [0, 0], sizes = [1, 8], strides = [1, 1]} : vector<6x8xf32> to vector<1x8xf32>
    %11 = vector.shape_cast %10 : vector<1x8xf32> to vector<8xf32>
    %12 = vector.shape_cast %11 : vector<8xf32> to vector<1x1x1x8xf32>
    %13 = vector.broadcast %12 : vector<1x1x1x8xf32> to vector<1x8x8x8xf32>
    %14 = arith.mulf %1, %13 : vector<1x8x8x8xf32>
    %15 = vector.extract_strided_slice %4 {offsets = [1, 0], sizes = [1, 8], strides = [1, 1]} : vector<6x8xf32> to vector<1x8xf32>
    %16 = vector.shape_cast %15 : vector<1x8xf32> to vector<8xf32>
    %17 = vector.shape_cast %16 : vector<8xf32> to vector<1x1x1x8xf32>
    %18 = vector.broadcast %17 : vector<1x1x1x8xf32> to vector<1x8x8x8xf32>
    %19 = arith.mulf %7, %18 : vector<1x8x8x8xf32>
    %20 = arith.addf %14, %19 : vector<1x8x8x8xf32>
    %21 = vector.extract_strided_slice %4 {offsets = [2, 0], sizes = [1, 8], strides = [1, 1]} : vector<6x8xf32> to vector<1x8xf32>
    %22 = vector.shape_cast %21 : vector<1x8xf32> to vector<8xf32>
    %23 = vector.shape_cast %22 : vector<8xf32> to vector<1x1x1x8xf32>
    %24 = vector.broadcast %23 : vector<1x1x1x8xf32> to vector<1x8x8x8xf32>
    %25 = arith.mulf %3, %24 : vector<1x8x8x8xf32>
    %26 = vector.extract_strided_slice %4 {offsets = [3, 0], sizes = [1, 8], strides = [1, 1]} : vector<6x8xf32> to vector<1x8xf32>
    %27 = vector.shape_cast %26 : vector<1x8xf32> to vector<8xf32>
    %28 = vector.shape_cast %27 : vector<8xf32> to vector<1x1x1x8xf32>
    %29 = vector.broadcast %28 : vector<1x1x1x8xf32> to vector<1x8x8x8xf32>
    %30 = arith.mulf %9, %29 : vector<1x8x8x8xf32>
    %31 = arith.addf %25, %30 : vector<1x8x8x8xf32>
    %32 = vector.extract_strided_slice %4 {offsets = [4, 0], sizes = [1, 8], strides = [1, 1]} : vector<6x8xf32> to vector<1x8xf32>
    %33 = vector.shape_cast %32 : vector<1x8xf32> to vector<8xf32>
    %34 = vector.shape_cast %33 : vector<8xf32> to vector<1x1x1x8xf32>
    %35 = vector.broadcast %34 : vector<1x1x1x8xf32> to vector<1x8x8x8xf32>
    %36 = arith.mulf %1, %35 : vector<1x8x8x8xf32>
    %37 = vector.extract_strided_slice %4 {offsets = [5, 0], sizes = [1, 8], strides = [1, 1]} : vector<6x8xf32> to vector<1x8xf32>
    %38 = vector.shape_cast %37 : vector<1x8xf32> to vector<8xf32>
    %39 = vector.shape_cast %38 : vector<8xf32> to vector<1x1x1x8xf32>
    %40 = vector.broadcast %39 : vector<1x1x1x8xf32> to vector<1x8x8x8xf32>
    %41 = arith.mulf %7, %40 : vector<1x8x8x8xf32>
    %42 = arith.addf %36, %41 : vector<1x8x8x8xf32>
    %cst_10 = arith.constant 0.000000e+00 : f32
    %43 = vector.broadcast %cst_10 : f32 to vector<1x1x8x8xf32>
    %44 = arith.addf %20, %31 : vector<1x8x8x8xf32>
    %45 = vector.extract_strided_slice %42 {offsets = [0, 1, 0, 0], sizes = [1, 7, 8, 8], strides = [1, 1, 1, 1]} : vector<1x8x8x8xf32> to vector<1x7x8x8xf32>
    %46 = tpu.concatenate %45, %43 in 1 : vector<1x7x8x8xf32>, vector<1x1x8x8xf32> -> vector<1x8x8x8xf32>
    %47 = arith.addf %44, %46 : vector<1x8x8x8xf32>
    %48 = vector.shape_cast %47 : vector<1x8x8x8xf32> to vector<64x8xf32>
    %c0_11 = arith.constant 0 : index
    %c0_12 = arith.constant 0 : index
    %49 = vector.load %arg3[%c0_11, %c0_12] : memref<8x4xf32, #tpu.memory_space<vmem>>, vector<8x4xf32>
    %cst_13 = arith.constant dense<0.000000e+00> : vector<64x4xf32>
    %50 = tpu.matmul %48, %49, %cst_13 {dimension_numbers = #tpu.dot_dimension_numbers<[1], [0], [0], [1], [0, 0, 1, 1], [], []>} : vector<64x8xf32>, vector<8x4xf32>, vector<64x4xf32> -> vector<64x4xf32>
    %c0_14 = arith.constant 0 : index
    %c0_15 = arith.constant 0 : index
    %51 = vector.load %arg4[%c0_14, %c0_15] : memref<1x4xf32, #tpu.memory_space<vmem>>, vector<1x4xf32>
    %52 = vector.broadcast %51 : vector<1x4xf32> to vector<64x4xf32>
    %53 = arith.addf %50, %52 : vector<64x4xf32>
    %cst_16 = arith.constant 0.000000e+00 : f32
    %54 = vector.broadcast %cst_16 : f32 to vector<64x4xf32>
    %55 = arith.maximumf %53, %54 : vector<64x4xf32>
    %c0_17 = arith.constant 0 : index
    %c0_18 = arith.constant 0 : index
    %56 = vector.load %arg5[%c0_17, %c0_18] : memref<64x4xf32, #tpu.memory_space<vmem>>, vector<64x4xf32>
    tpu.vector_store %arg5[%c0_17, %c0_18], %55 {strides = array<i32>} : memref<64x4xf32, #tpu.memory_space<vmem>>, vector<64x4xf32>,
    return
  }
  func.func @transform_0(%arg0: i32) -> (i32, i32, i32, i32, i32) {
    %c0_i32 = arith.constant 0 : i32
    %c0_i32_0 = arith.constant 0 : i32
    %c0_i32_1 = arith.constant 0 : i32
    %c0_i32_2 = arith.constant 0 : i32
    %c0_i32_3 = arith.constant 0 : i32
    return %arg0, %c0_i32, %c0_i32_0, %c0_i32_1, %c0_i32_2 : i32, i32, i32, i32, i32
  }
  func.func @transform_1(%arg0: i32) -> (i32, i32) {
    %c0_i32 = arith.constant 0 : i32
    %c0_i32_0 = arith.constant 0 : i32
    %c0_i32_1 = arith.constant 0 : i32
    return %c0_i32, %c0_i32_0 : i32, i32
  }
  func.func @transform_2(%arg0: i32) -> (i32, i32) {
    %c0_i32 = arith.constant 0 : i32
    %c0_i32_0 = arith.constant 0 : i32
    %c0_i32_1 = arith.constant 0 : i32
    return %c0_i32, %c0_i32_0 : i32, i32
  }
  func.func @transform_3(%arg0: i32) -> (i32, i32) {
    %c0_i32 = arith.constant 0 : i32
    %c0_i32_0 = arith.constant 0 : i32
    %c0_i32_1 = arith.constant 0 : i32
    return %c0_i32, %c0_i32_0 : i32, i32
  }
  func.func @transform_4(%arg0: i32) -> (i32, i32) {
    %c0_i32 = arith.constant 0 : i32
    %c0_i32_0 = arith.constant 0 : i32
    return %arg0, %c0_i32 : i32, i32
  }
}

</mosaic_0001>

<llo_original>
// kernel: final_blaze_block.1
$region0: #{final_blaze_block.1}
  #allocation0 [shape = 'u32[]', space=smem, size = 0x4, offset = 0x4, fixed_abs, tag = 'smem constant byte address 0x4 - core index']
  #allocation1 [shape = 'u32[144,128]{1,0:T(1,128)}', space=vmem, size = 0x12000, scoped, tag = 'internal scratch']
  %s0 = inlined_call_operand.vmem [shape: f32[2,8,2,8,8], index: 0, kind: input, shape index: {}]
  %s1 = inlined_call_operand.vmem [shape: f32[6,8], index: 1, kind: input, shape index: {}]
  %s2 = inlined_call_operand.vmem [shape: f32[8,4], index: 2, kind: input, shape index: {}]
  %s3 = inlined_call_operand.vmem [shape: f32[1,4], index: 3, kind: input, shape index: {}]
  %s4 = inlined_call_operand.vmem [shape: f32[128,4], index: 4, kind: output, shape index: {}]
  %s5 = sld [smem:[#allocation0]]
  $region49: #{final_blaze_block.1} parent=0
    _
  %s7 = ssub.s32 1, %s5
  %s8 = scalar_select 0, %s7, %s5
  loop: start=0, step=1, limit=4
  $region2: #{final_blaze_block.1} parent=0 // loop_pre_header
    _
  $region3: #{final_blaze_block.1} parent=0 // loop_header
    %s10 = sphi 0, %s14
    %p11 = scmp.ge.s32.totalorder %s10, 4
    %s20 = sphi 0, %s22
    %s23 = sphi 0, %s20
    %s24 = sphi 0, %s23
    %s40 = sphi 0, %s24
    %s44 = sphi 0, %s44
    %s46 = sphi 0, %s44
    %s47 = sphi 0, %s46
    %s61 = sphi 0, %s47
    %s65 = sphi 0, %s65
    %s67 = sphi 0, %s65
    %s68 = sphi 0, %s67
    %s82 = sphi 0, %s68
    %s86 = sphi 0, %s86
    %s88 = sphi 0, %s86
    %s89 = sphi 0, %s88
    %s103 = sphi 0, %s89
    %s109 = sphi 0, %s111
    %s112 = sphi 0, %s109
    %s113 = sphi 0, %s112
    %s129 = sphi 0, %s113
  $region4: #{final_blaze_block.1} parent=0 // loop_header_branch
    %13 = sbr.rel (%p11) target = $region8
  $region5: #{final_blaze_block.1} parent=0 // loop_body
    %s15 = ssub.s32 %s10, 1
    %s16 = ssub.s32 %s10, 2
    %s17 = sadd.s32 %s10, 1
    %s18 = ssub.s32 %s10, %s17
    %p19 = scmp.eq.s32.totalorder %s18, 0
    %s21 = sadd.s32 %s20, 1
    %s22 = scalar_select %p19, %s20, %s21
    %p25 = pneg %p19
    %p26 = scmp.eq.s32.totalorder %s10, 1
    %p27 = por %p25, %p26
    %p28 = scmp.ne.s32.totalorder %s20, %s23
    %p29 = scmp.eq.s32.totalorder %s10, 0
    %p30 = por %p28, %p29
    %p31 = scmp.ne.s32.totalorder %s20, %s23
    %p32 = scmp.eq.s32.totalorder %s15, 1
    %p33 = por %p31, %p32
    %p34 = scmp.ne.s32.totalorder %s23, %s24
    %p35 = scmp.eq.s32.totalorder %s15, 0
    %p36 = por %p34, %p35
    %p37 = scmp.ne.s32.totalorder %s23, %s24
    %p38 = scmp.eq.s32.totalorder %s16, 1
    %p39 = por %p37, %p38
    %p41 = scmp.ne.s32.totalorder %s24, %s40
    %p42 = scmp.eq.s32.totalorder %s16, 0
    %p43 = por %p41, %p42
    %s45 = sadd.s32 %s44, 1
    %p48 = scmp.eq.s32.totalorder %s10, 1
    %p49 = scmp.ne.s32.totalorder %s44, %s46
    %p50 = scmp.eq.s32.totalorder %s10, 0
    %p51 = por %p49, %p50
    %p52 = scmp.ne.s32.totalorder %s44, %s46
    %p53 = scmp.eq.s32.totalorder %s15, 1
    %p54 = por %p52, %p53
    %p55 = scmp.ne.s32.totalorder %s46, %s47
    %p56 = scmp.eq.s32.totalorder %s15, 0
    %p57 = por %p55, %p56
    %p58 = scmp.ne.s32.totalorder %s46, %s47
    %p59 = scmp.eq.s32.totalorder %s16, 1
    %p60 = por %p58, %p59
    %p62 = scmp.ne.s32.totalorder %s47, %s61
    %p63 = scmp.eq.s32.totalorder %s16, 0
    %p64 = por %p62, %p63
    %s66 = sadd.s32 %s65, 1
    %p69 = scmp.eq.s32.totalorder %s10, 1
    %p70 = scmp.ne.s32.totalorder %s65, %s67
    %p71 = scmp.eq.s32.totalorder %s10, 0
    %p72 = por %p70, %p71
    %p73 = scmp.ne.s32.totalorder %s65, %s67
    %p74 = scmp.eq.s32.totalorder %s15, 1
    %p75 = por %p73, %p74
    %p76 = scmp.ne.s32.totalorder %s67, %s68
    %p77 = scmp.eq.s32.totalorder %s15, 0
    %p78 = por %p76, %p77
    %p79 = scmp.ne.s32.totalorder %s67, %s68
    %p80 = scmp.eq.s32.totalorder %s16, 1
    %p81 = por %p79, %p80
    %p83 = scmp.ne.s32.totalorder %s68, %s82
    %p84 = scmp.eq.s32.totalorder %s16, 0
    %p85 = por %p83, %p84
    %s87 = sadd.s32 %s86, 1
    %p90 = scmp.eq.s32.totalorder %s10, 1
    %p91 = scmp.ne.s32.totalorder %s86, %s88
    %p92 = scmp.eq.s32.totalorder %s10, 0
    %p93 = por %p91, %p92
    %p94 = scmp.ne.s32.totalorder %s86, %s88
    %p95 = scmp.eq.s32.totalorder %s15, 1
    %p96 = por %p94, %p95
    %p97 = scmp.ne.s32.totalorder %s88, %s89
    %p98 = scmp.eq.s32.totalorder %s15, 0
    %p99 = por %p97, %p98
    %p100 = scmp.ne.s32.totalorder %s88, %s89
    %p101 = scmp.eq.s32.totalorder %s16, 1
    %p102 = por %p100, %p101
    %p104 = scmp.ne.s32.totalorder %s89, %s103
    %p105 = scmp.eq.s32.totalorder %s16, 0
    %p106 = por %p104, %p105
    %s107 = ssub.s32 %s10, %s17
    %p108 = scmp.eq.s32.totalorder %s107, 0
    %s110 = sadd.s32 %s109, 1
    %s111 = scalar_select %p108, %s109, %s110
    %p114 = pneg %p108
    %p115 = scmp.eq.s32.totalorder %s10, 1
    %p116 = por %p114, %p115
    %p117 = scmp.ne.s32.totalorder %s109, %s112
    %p118 = scmp.eq.s32.totalorder %s10, 0
    %p119 = por %p117, %p118
    %p120 = scmp.ne.s32.totalorder %s109, %s112
    %p121 = scmp.eq.s32.totalorder %s15, 1
    %p122 = por %p120, %p121
    %p123 = scmp.ne.s32.totalorder %s112, %s113
    %p124 = scmp.eq.s32.totalorder %s15, 0
    %p125 = por %p123, %p124
    %p126 = scmp.ne.s32.totalorder %s112, %s113
    %p127 = scmp.eq.s32.totalorder %s16, 1
    %p128 = por %p126, %p127
    %p130 = scmp.ne.s32.totalorder %s113, %s129
    %p131 = scmp.eq.s32.totalorder %s16, 0
    %p132 = por %p130, %p131
    %p133 = scmp.le.s32.totalorder 1, %s10
    %p134 = scmp.lt.s32.totalorder %s10, 3
    %p135 = pnand %p133, %p134
    %p136 = pneg %p135
    // Predicated region
    $region9: #{final_blaze_block.1} parent=5 // pred_check
      _
    $region10: #{final_blaze_block.1} parent=5 // pred_check_branch
      %138 = sbr.rel (%p135) target = $region12
    $region11: #{final_blaze_block.1} parent=5 // pred_region
      %s139 = ssub.s32 %s10, 1
      // Predicated region
      $region13: #{final_blaze_block.1} parent=11 // pred_check
        %p140 = pneg %p57
      $region14: #{final_blaze_block.1} parent=11 // pred_check_branch
        %142 = sbr.rel (%p140) target = $region16
      $region15: #{final_blaze_block.1} parent=11 // pred_region
        _
      $region16: #{final_blaze_block.1} parent=11 // pred_fallthru
        _
      // Predicated region
      $region17: #{final_blaze_block.1} parent=11 // pred_check
        %p143 = pneg %p78
      $region18: #{final_blaze_block.1} parent=11 // pred_check_branch
        %145 = sbr.rel (%p143) target = $region20
      $region19: #{final_blaze_block.1} parent=11 // pred_region
        _
      $region20: #{final_blaze_block.1} parent=11 // pred_fallthru
        _
      // Predicated region
      $region21: #{final_blaze_block.1} parent=11 // pred_check
        %p146 = pneg %p99
      $region22: #{final_blaze_block.1} parent=11 // pred_check_branch
        %148 = sbr.rel (%p146) target = $region24
      $region23: #{final_blaze_block.1} parent=11 // pred_region
        _
      $region24: #{final_blaze_block.1} parent=11 // pred_fallthru
        _
    $region12: #{final_blaze_block.1} parent=5 // pred_fallthru
      _
    %p149 = scmp.lt.s32.totalorder %s10, 2
    // Predicated region
    $region25: #{final_blaze_block.1} parent=5 // pred_check
      %p150 = pneg %p149
    $region26: #{final_blaze_block.1} parent=5 // pred_check_branch
      %152 = sbr.rel (%p150) target = $region28
    $region27: #{final_blaze_block.1} parent=5 // pred_region
      // Predicated region
      $region29: #{final_blaze_block.1} parent=27 // pred_check
        %p153 = pneg %p30
      $region30: #{final_blaze_block.1} parent=27 // pred_check_branch
        %155 = sbr.rel (%p153) target = $region32
      $region31: #{final_blaze_block.1} parent=27 // pred_region
        %p156 = scmp.lt.s32.totalorder %s10, 1
        %s157 = scalar_select %p156, %s10, 1
        %s158 = smul.addr %s157, 16
        %s159 = smul.addr %s158, 8
        %s160 = scalar_lea.vmem %s0, %s159
      $region32: #{final_blaze_block.1} parent=27 // pred_fallthru
        _
    $region28: #{final_blaze_block.1} parent=5 // pred_fallthru
      _
    %p161 = scmp.le.s32.totalorder 1, %s10
    %p162 = scmp.lt.s32.totalorder %s10, 3
    %p163 = pnand %p161, %p162
    %p164 = pneg %p163
    // Predicated region
    $region33: #{final_blaze_block.1} parent=5 // pred_check
      _
    $region34: #{final_blaze_block.1} parent=5 // pred_check_branch
      %166 = sbr.rel (%p163) target = $region36
    $region35: #{final_blaze_block.1} parent=5 // pred_region
      %s167 = ssub.s32 %s10, 1
      %p168 = scmp.lt.s32.totalorder %s15, 1
      %s169 = scalar_select %p168, %s15, 1
      %s170 = smul.addr %s169, 16
      %s171 = smul.addr %s170, 8
      %s172 = scalar_lea.vmem %s0, %s171
      %p173 = pneg %p36
      %p174 = pneg %p33
      %p175 = pneg %p57
      %p176 = pneg %p54
      %p177 = pneg %p78
      %p178 = pneg %p75
      %p179 = pneg %p99
      %p180 = pneg %p96
      %p181 = pneg %p125
      %p182 = pneg %p122
      %s183 = smul.u32 8, %s15
      %p184 = scmp.lt.s32.totalorder %s183, 15
      %s185 = scalar_select %p184, %s183, 15
      %s186 = smul.addr %s185, 8
      %s187 = scalar_lea.vmem %s4, %s186
      %p188 = scmp.lt.s32.totalorder %s15, 1
      %s189 = scalar_select %p188, %s15, 1
      %s190 = smul.addr %s189, 16
      %s191 = smul.addr %s190, 8
      %s192 = scalar_lea.vmem %s0, %s191
      %s193 = smul.u32 8, %s15
      %p194 = scmp.lt.s32.totalorder %s193, 15
      %s195 = scalar_select %p194, %s193, 15
      %s196 = smul.addr %s195, 8
      %s197 = scalar_lea.vmem %s4, %s196
      %s198 = smul.u32 8, %s15
      %v199 = vld [vmem:[%s192] sm:$0xff]
      %v200 = vld [vmem:[%s192 + $0x10] sm:$0xff]
      %v201 = vld [vmem:[%s192 + $0x20] sm:$0xff]
      %v202 = vld [vmem:[%s192 + $0x30] sm:$0xff]
      %v203 = vld [vmem:[%s192 + $0x40] sm:$0xff]
      %v204 = vld [vmem:[%s192 + $0x50] sm:$0xff]
      %v205 = vld [vmem:[%s192 + $0x60] sm:$0xff]
      %v206 = vld [vmem:[%s192 + $0x70] sm:$0xff]
      %s207 = scalar_lea.vmem %s192, 8
      %v208 = vld [vmem:[%s207] sm:$0xff]
      %v209 = vld [vmem:[%s207 + $0x10] sm:$0xff]
      %v210 = vld [vmem:[%s207 + $0x20] sm:$0xff]
      %v211 = vld [vmem:[%s207 + $0x30] sm:$0xff]
      %v212 = vld [vmem:[%s207 + $0x40] sm:$0xff]
      %v213 = vld [vmem:[%s207 + $0x50] sm:$0xff]
      %v214 = vld [vmem:[%s207 + $0x60] sm:$0xff]
      %v215 = vld [vmem:[%s207 + $0x70] sm:$0xff]
      %v216 = vld [vmem:[%s1] sm:$0x3f]
      %v225 = vrot.slane %v199, 1
      %v226 = vrot.slane %v200, 1
      %v227 = vrot.slane %v201, 1
      %v228 = vrot.slane %v202, 1
      %v229 = vrot.slane %v203, 1
      %v230 = vrot.slane %v204, 1
      %v231 = vrot.slane %v205, 1
      %v232 = vrot.slane %v206, 1
      %vm241 = vcmask 1046528
      %v242 = vsel %vm241, %v225, 0.0
      %v243 = vsel %vm241, %v226, 0.0
      %v244 = vsel %vm241, %v227, 0.0
      %v245 = vsel %vm241, %v228, 0.0
      %v246 = vsel %vm241, %v229, 0.0
      %v247 = vsel %vm241, %v230, 0.0
      %v248 = vsel %vm241, %v231, 0.0
      %v249 = vsel %vm241, %v232, 0.0
      %v258 = vrot.slane %v208, 1
      %v259 = vrot.slane %v209, 1
      %v260 = vrot.slane %v210, 1
      %v261 = vrot.slane %v211, 1
      %v262 = vrot.slane %v212, 1
      %v263 = vrot.slane %v213, 1
      %v264 = vrot.slane %v214, 1
      %v265 = vrot.slane %v215, 1
      %v274 = vsel %vm241, %v258, 0.0
      %v275 = vsel %vm241, %v259, 0.0
      %v276 = vsel %vm241, %v260, 0.0
      %v277 = vsel %vm241, %v261, 0.0
      %v278 = vsel %vm241, %v262, 0.0
      %v279 = vsel %vm241, %v263, 0.0
      %v280 = vsel %vm241, %v264, 0.0
      %v281 = vsel %vm241, %v265, 0.0
      %v282 = vlaneseq
      %v283 = vshrl.u32 %v282, 7
      %v284 = vsub.s32 0, %v283
      %v285 = vrot.slane %v216, %v284
      %v286 = vmul.f32 %v199, %v285
      %v287 = vmul.f32 %v200, %v285
      %v288 = vmul.f32 %v201, %v285
      %v289 = vmul.f32 %v202, %v285
      %v290 = vmul.f32 %v203, %v285
      %v291 = vmul.f32 %v204, %v285
      %v292 = vmul.f32 %v205, %v285
      %v293 = vmul.f32 %v206, %v285
      %v294 = vlaneseq
      %v295 = vshrl.u32 %v294, 7
      %v296 = vsub.s32 1, %v295
      %v297 = vrot.slane %v216, %v296
      %v298 = vmul.f32 %v242, %v297
      %v299 = vmul.f32 %v243, %v297
      %v300 = vmul.f32 %v244, %v297
      %v301 = vmul.f32 %v245, %v297
      %v302 = vmul.f32 %v246, %v297
      %v303 = vmul.f32 %v247, %v297
      %v304 = vmul.f32 %v248, %v297
      %v305 = vmul.f32 %v249, %v297
      %v306 = vadd.f32 %v286, %v298
      %v307 = vadd.f32 %v287, %v299
      %v308 = vadd.f32 %v288, %v300
      %v309 = vadd.f32 %v289, %v301
      %v310 = vadd.f32 %v290, %v302
      %v311 = vadd.f32 %v291, %v303
      %v312 = vadd.f32 %v292, %v304
      %v313 = vadd.f32 %v293, %v305
      %v314 = vlaneseq
      %v315 = vshrl.u32 %v314, 7
      %v316 = vsub.s32 2, %v315
      %v317 = vrot.slane %v216, %v316
      %v318 = vmul.f32 %v208, %v317
      %v319 = vmul.f32 %v209, %v317
      %v320 = vmul.f32 %v210, %v317
      %v321 = vmul.f32 %v211, %v317
      %v322 = vmul.f32 %v212, %v317
      %v323 = vmul.f32 %v213, %v317
      %v324 = vmul.f32 %v214, %v317
      %v325 = vmul.f32 %v215, %v317
      %v326 = vlaneseq
      %v327 = vshrl.u32 %v326, 7
      %v328 = vsub.s32 3, %v327
      %v329 = vrot.slane %v216, %v328
      %v330 = vmul.f32 %v274, %v329
      %v331 = vmul.f32 %v275, %v329
      %v332 = vmul.f32 %v276, %v329
      %v333 = vmul.f32 %v277, %v329
      %v334 = vmul.f32 %v278, %v329
      %v335 = vmul.f32 %v279, %v329
      %v336 = vmul.f32 %v280, %v329
      %v337 = vmul.f32 %v281, %v329
      %v338 = vadd.f32 %v318, %v330
      %v339 = vadd.f32 %v319, %v331
      %v340 = vadd.f32 %v320, %v332
      %v341 = vadd.f32 %v321, %v333
      %v342 = vadd.f32 %v322, %v334
      %v343 = vadd.f32 %v323, %v335
      %v344 = vadd.f32 %v324, %v336
      %v345 = vadd.f32 %v325, %v337
      %v346 = vlaneseq
      %v347 = vshrl.u32 %v346, 7
      %v348 = vsub.s32 4, %v347
      %v349 = vrot.slane %v216, %v348
      %v350 = vmul.f32 %v200, %v349
      %v351 = vmul.f32 %v201, %v349
      %v352 = vmul.f32 %v202, %v349
      %v353 = vmul.f32 %v203, %v349
      %v354 = vmul.f32 %v204, %v349
      %v355 = vmul.f32 %v205, %v349
      %v356 = vmul.f32 %v206, %v349
      %v357 = vlaneseq
      %v358 = vshrl.u32 %v357, 7
      %v359 = vsub.s32 5, %v358
      %v360 = vrot.slane %v216, %v359
      %v361 = vmul.f32 %v243, %v360
      %v362 = vmul.f32 %v244, %v360
      %v363 = vmul.f32 %v245, %v360
      %v364 = vmul.f32 %v246, %v360
      %v365 = vmul.f32 %v247, %v360
      %v366 = vmul.f32 %v248, %v360
      %v367 = vmul.f32 %v249, %v360
      %v368 = vadd.f32 %v350, %v361
      %v369 = vadd.f32 %v351, %v362
      %v370 = vadd.f32 %v352, %v363
      %v371 = vadd.f32 %v353, %v364
      %v372 = vadd.f32 %v354, %v365
      %v373 = vadd.f32 %v355, %v366
      %v374 = vadd.f32 %v356, %v367
      %v375 = vadd.f32 %v306, %v338
      %v376 = vadd.f32 %v307, %v339
      %v377 = vadd.f32 %v308, %v340
      %v378 = vadd.f32 %v309, %v341
      %v379 = vadd.f32 %v310, %v342
      %v380 = vadd.f32 %v311, %v343
      %v381 = vadd.f32 %v312, %v344
      %v382 = vadd.f32 %v313, %v345
      %v383 = vadd.f32 %v375, %v368
      %v384 = vadd.f32 %v376, %v369
      %v385 = vadd.f32 %v377, %v370
      %v386 = vadd.f32 %v378, %v371
      %v387 = vadd.f32 %v379, %v372
      %v388 = vadd.f32 %v380, %v373
      %v389 = vadd.f32 %v381, %v374
      %v390 = vadd.f32 %v382, 0.0
      %v391 = vld [vmem:[%s2] sm:$0xff]
      %v392 = vld [vmem:[%s3] sm:$0x1]
      %v394 = vlaneseq
      %v395 = vshrl.u32 %v394, 7
      %v396 = vsub.s32 0, %v395
      %v397 = vrot.slane %v392, %v396
      %vm399 = vcmask 64512
      %v401 = vsel %vm399, %v383, 0
      %v404 = vsel %vm399, %v384, 0
      %v407 = vsel %vm399, %v385, 0
      %v410 = vsel %vm399, %v386, 0
      %v413 = vsel %vm399, %v387, 0
      %v416 = vsel %vm399, %v388, 0
      %v419 = vsel %vm399, %v389, 0
      %v422 = vsel %vm399, %v390, 0
      %424 = vmatprep.subr.mxu0 0.0
      %425 = vmatpush1.msra.mxu0 %v391
      %426 = vmatprep.subr.mxu0 0.0
      %427 = vmatpush1.msra.mxu0 0.0
      %428 = vmatprep.subr.mxu0 0.0
      %429 = vmatpush1.msra.mxu0 0.0
      %430 = vmatprep.subr.mxu0 0.0
      %431 = vmatpush1.msra.mxu0 0.0
      %432 = vmatprep.subr.mxu0 0.0
      %433 = vmatpush1.msra.mxu0 0.0
      %434 = vmatprep.subr.mxu0 0.0
      %435 = vmatpush1.msra.mxu0 0.0
      %436 = vmatprep.subr.mxu0 0.0
      %437 = vmatpush1.msra.mxu0 0.0
      %438 = vmatprep.subr.mxu0 0.0
      %439 = vmatpush1.msra.mxu0 0.0
      %440 = vmatprep.subr.mxu0 0.0
      %441 = vmatpush1.msra.mxu0 0.0
      %442 = vmatprep.subr.mxu0 0.0
      %443 = vmatpush1.msra.mxu0 0.0
      %444 = vmatprep.subr.mxu0 0.0
      %445 = vmatpush1.msra.mxu0 0.0
      %446 = vmatprep.subr.mxu0 0.0
      %447 = vmatpush1.msra.mxu0 0.0
      %448 = vmatprep.subr.mxu0 0.0
      %449 = vmatpush1.msra.mxu0 0.0
      %450 = vmatprep.subr.mxu0 0.0
      %451 = vmatpush1.msra.mxu0 0.0
      %452 = vmatprep.subr.mxu0 0.0
      %453 = vmatpush1.msra.mxu0 0.0
      %454 = vmatprep.subr.mxu0 0.0
      %455 = vmatpush1.msra.mxu0 0.0
      %456 = vmatprep.subr.mxu0 0.0
      %457 = vmatpush1.msra.mxu0 0.0
      %458 = vmatprep.subr.mxu0 0.0
      %459 = vmatpush1.msra.mxu0 0.0
      %460 = vmatprep.subr.mxu0 0.0
      %461 = vmatpush1.msra.mxu0 0.0
      %462 = vmatprep.subr.mxu0 0.0
      %463 = vmatpush1.msra.mxu0 0.0
      %464 = vmatprep.subr.mxu0 0.0
      %465 = vmatpush1.msra.mxu0 0.0
      %466 = vmatprep.subr.mxu0 0.0
      %467 = vmatpush1.msra.mxu0 0.0
      %468 = vmatprep.subr.mxu0 0.0
      %469 = vmatpush1.msra.mxu0 0.0
      %470 = vmatprep.subr.mxu0 0.0
      %471 = vmatpush1.msra.mxu0 0.0
      %472 = vmatprep.subr.mxu0 0.0
      %473 = vmatpush1.msra.mxu0 0.0
      %474 = vmatprep.subr.mxu0 0.0
      %475 = vmatpush1.msra.mxu0 0.0
      %476 = vmatprep.subr.mxu0 0.0
      %477 = vmatpush1.msra.mxu0 0.0
      %478 = vmatprep.subr.mxu0 0.0
      %479 = vmatpush1.msra.mxu0 0.0
      %480 = vmatprep.subr.mxu0 0.0
      %481 = vmatpush1.msra.mxu0 0.0
      %482 = vmatprep.subr.mxu0 0.0
      %483 = vmatpush1.msra.mxu0 0.0
      %484 = vmatprep.subr.mxu0 0.0
      %485 = vmatpush1.msra.mxu0 0.0
      %486 = vmatprep.subr.mxu0 0.0
      %487 = vmatpush1.msra.mxu0 0.0
      %488 = vmatprep.mubr.f32.mxu0 0.0
      %489 = vmatmul.mubr.f32.gmra.mrb[0].mxu0 %v401
      %v490 = vpop.f32.mrb[0].mxu0
      %v491 = vadd.f32 %v397, %v490
      %v492 = vpop.f32.mrb[0].mxu0
      %493 = vmatprep.mubr.f32.mxu0 0.0
      %494 = vmatmul.mubr.f32.gmra.mrb[0].mxu0 %v404
      %v495 = vpop.f32.mrb[0].mxu0
      %v496 = vadd.f32 %v397, %v495
      %v497 = vpop.f32.mrb[0].mxu0
      %498 = vmatprep.mubr.f32.mxu0 0.0
      %499 = vmatmul.mubr.f32.gmra.mrb[0].mxu0 %v407
      %v500 = vpop.f32.mrb[0].mxu0
      %v501 = vadd.f32 %v397, %v500
      %v502 = vpop.f32.mrb[0].mxu0
      %503 = vmatprep.mubr.f32.mxu0 0.0
      %504 = vmatmul.mubr.f32.gmra.mrb[0].mxu0 %v410
      %v505 = vpop.f32.mrb[0].mxu0
      %v506 = vadd.f32 %v397, %v505
      %v507 = vpop.f32.mrb[0].mxu0
      %508 = vmatprep.mubr.f32.mxu0 0.0
      %509 = vmatmul.mubr.f32.gmra.mrb[0].mxu0 %v413
      %v510 = vpop.f32.mrb[0].mxu0
      %v511 = vadd.f32 %v397, %v510
      %v512 = vpop.f32.mrb[0].mxu0
      %513 = vmatprep.mubr.f32.mxu0 0.0
      %514 = vmatmul.mubr.f32.gmra.mrb[0].mxu0 %v416
      %v515 = vpop.f32.mrb[0].mxu0
      %v516 = vadd.f32 %v397, %v515
      %v517 = vpop.f32.mrb[0].mxu0
      %518 = vmatprep.mubr.f32.mxu0 0.0
      %519 = vmatmul.mubr.f32.gmra.mrb[0].mxu0 %v419
      %v520 = vpop.f32.mrb[0].mxu0
      %v521 = vadd.f32 %v397, %v520
      %v522 = vpop.f32.mrb[0].mxu0
      %523 = vmatprep.mubr.f32.mxu0 0.0
      %524 = vmatmul.mubr.f32.gmra.mrb[0].mxu0 %v422
      %v525 = vpop.f32.mrb[0].mxu0
      %v526 = vadd.f32 %v397, %v525
      %v527 = vpop.f32.mrb[0].mxu0
      %528 = vdwg.mxu0
      %v529 = vmax.f32 %v491, 0.0
      %v530 = vmax.f32 %v496, 0.0
      %v531 = vmax.f32 %v501, 0.0
      %v532 = vmax.f32 %v506, 0.0
      %v533 = vmax.f32 %v511, 0.0
      %v534 = vmax.f32 %v516, 0.0
      %v535 = vmax.f32 %v521, 0.0
      %v536 = vmax.f32 %v526, 0.0
      %vm537 = vcmask 31744
      %538 = vst.msk [vmem:[%s197] sm:$0xff] %vm537, %v529
      %539 = vst.msk [vmem:[%s197 + $0x8] sm:$0xff] %vm537, %v530
      %540 = vst.msk [vmem:[%s197 + $0x10] sm:$0xff] %vm537, %v531
      %541 = vst.msk [vmem:[%s197 + $0x18] sm:$0xff] %vm537, %v532
      %542 = vst.msk [vmem:[%s197 + $0x20] sm:$0xff] %vm537, %v533
      %543 = vst.msk [vmem:[%s197 + $0x28] sm:$0xff] %vm537, %v534
      %544 = vst.msk [vmem:[%s197 + $0x30] sm:$0xff] %vm537, %v535
      %545 = vst.msk [vmem:[%s197 + $0x38] sm:$0xff] %vm537, %v536
      %s546 = smul.u32 8, %s15
      %p547 = scmp.lt.s32.totalorder %s546, 15
      %s548 = scalar_select %p547, %s546, 15
      %s549 = smul.addr %s548, 8
      %s550 = scalar_lea.vmem %s4, %s549
      // Predicated region
      $region37: #{final_blaze_block.1} parent=35 // pred_check
        %p551 = pneg %p122
      $region38: #{final_blaze_block.1} parent=35 // pred_check_branch
        %553 = sbr.rel (%p551) target = $region40
      $region39: #{final_blaze_block.1} parent=35 // pred_region
        %s554 = smul.u32 8, %s15
      $region40: #{final_blaze_block.1} parent=35 // pred_fallthru
        _
    $region36: #{final_blaze_block.1} parent=5 // pred_fallthru
      _
    %p555 = scmp.le.s32.totalorder 2, %s10
    // Predicated region
    $region41: #{final_blaze_block.1} parent=5 // pred_check
      %p556 = pneg %p555
    $region42: #{final_blaze_block.1} parent=5 // pred_check_branch
      %558 = sbr.rel (%p556) target = $region44
    $region43: #{final_blaze_block.1} parent=5 // pred_region
      %s559 = ssub.s32 %s10, 2
      // Predicated region
      $region45: #{final_blaze_block.1} parent=43 // pred_check
        %p560 = pneg %p128
      $region46: #{final_blaze_block.1} parent=43 // pred_check_branch
        %562 = sbr.rel (%p560) target = $region48
      $region47: #{final_blaze_block.1} parent=43 // pred_region
        %s563 = smul.u32 8, %s16
        %p564 = scmp.lt.s32.totalorder %s563, 15
        %s565 = scalar_select %p564, %s563, 15
        %s566 = smul.addr %s565, 8
        %s567 = scalar_lea.vmem %s4, %s566
      $region48: #{final_blaze_block.1} parent=43 // pred_fallthru
        _
    $region44: #{final_blaze_block.1} parent=5 // pred_fallthru
      _
  $region6: #{final_blaze_block.1} parent=0 // loop_footer
    %s14 = sadd.s32 1, %s10
  $region7: #{final_blaze_block.1} parent=0 // loop_footer_branch
    %9 = sbr.rel target = $region3
  $region8: #{final_blaze_block.1} parent=0 // loop_exit
    _

</llo_original>
